<compile_context>
chip_gen: v5e
topology: v5e:2x2
jax: 0.10.0
libtpu: 0.0.40
codegen_flags: <defaults>
</compile_context>

<pallas_src>
import functools

import jax
import jax.numpy as jnp
from jax import lax
from jax.experimental import pallas as pl
from jax.experimental.pallas import tpu as pltpu


def _round_up8(n):
    return ((n + 7) // 8) * 8


def _mhsa_bottleneck_kernel(x_ref, w1_ref, wqkv_ref, pos_ref, w2_ref, bias_ref,
                            o_ref, *, shortcut, softmax_bf16):
    # Static sizes derived from the (slot-padded) parameter shapes.
    CS = w1_ref.shape[0]            # q/k slot rows   (= round_up8(C))
    Cout, VS = w2_ref.shape         # output channels, v-slot rows (ones row + v)
    N = x_ref.shape[2]              # H*W (lanes)

    x = x_ref[0]                    # (Cin, N) f32   — this grid step's batch

    w1 = w1_ref[...]                # (CS,      Cin) bf16, BN folded
    wqkv = wqkv_ref[...]            # (2CS+VS,  CS)  bf16, fused q/k/v (+ones row)
    w2 = w2_ref[...]                # (Cout,    VS)  bf16, BN folded, col0 = 0
    pos = pos_ref[...]              # (CS,      N)   bf16, rel_h + rel_w

    biases = bias_ref[...]          # (nb, 1) f32, 8-row-aligned slots
    b1 = biases[0:CS]                                   # (CS,     1)
    bqkv = biases[CS:3 * CS + VS]                       # (2CS+VS, 1)
    b2 = biases[3 * CS + VS:3 * CS + VS + Cout]         # (Cout,   1)

    # cv1: 1x1 conv (BN scale folded) + BN bias + SiLU.  Padding rows stay 0.
    h = jnp.dot(w1, x.astype(jnp.bfloat16),
                preferred_element_type=jnp.float32) + b1        # (CS, N)
    x1 = h * jax.nn.sigmoid(h)

    # Fused q/k/v projection (one MXU pass).  v-slot row 0 is the "ones" row
    # (zero weights, bias 1.0) used later as the softmax denominator.
    qkv = jnp.dot(wqkv, x1.astype(jnp.bfloat16),
                  preferred_element_type=jnp.float32) + bqkv    # (2CS+VS, N)

    qk = qkv[0:2 * CS].astype(jnp.bfloat16)                     # [q; k] (2CS, N)
    posq = jnp.concatenate(
        [pos, qkv[0:CS].astype(jnp.bfloat16)], axis=0)          # [pos; q] (2CS, N)

    # energy^T[j, i] = sum_c q[c,i]k[c,j] + sum_c pos[c,i]q[c,j]
    # Contract axis 0 of both (2CS, N) operands: lane-dense, MXU lhsT form,
    # no transposes; keys land on sublanes, queries on lanes.
    eT = lax.dot_general(qk, posq, (((0,), (0,)), ((), ())),
                         preferred_element_type=jnp.float32)    # (N_keys, N_q)

    # Softmax over keys == axis 0 of eT; keep it un-normalized and recover the
    # denominator from the baked-in ones row of the value slot.
    m = jnp.max(eT, axis=0, keepdims=True)                      # (1, N_q)
    if softmax_bf16:
        # bf16 EUP exp (v6e / v7x); also skips a separate f32->bf16 cast.
        p = jnp.exp((eT - m).astype(jnp.bfloat16))              # (N_keys, N_q)
        vones = qkv[2 * CS:2 * CS + VS].astype(jnp.bfloat16)    # (VS, N_keys)
    else:
        # v5e: no bf16 VPU/EUP — keep f32 and let the MXU run the f32 passes.
        p = jnp.exp(eT - m)
        vones = qkv[2 * CS:2 * CS + VS]

    # big[c, i] = sum_j v_slot[c, j] * p[j, i]; row 0 = softmax row sums.
    # Standard (M,K)x(K,N) jnp.dot: the (N,N) operand is contracted along its
    # MXU-natural axis -> no (N,N) transpose.
    big = jnp.dot(vones, p, preferred_element_type=jnp.float32)  # (VS, N_q)
    o = big * pl.reciprocal(big[0:1], approx=True)               # (VS, N_q)

    # cv2: 1x1 conv (BN folded) + bias + SiLU.  w2 col 0 and cols > C are zero,
    # so the ones/padding rows of `o` contribute nothing.
    h2 = jnp.dot(w2, o.astype(jnp.bfloat16),
                 preferred_element_type=jnp.float32) + b2        # (Cout, N)
    y = h2 * jax.nn.sigmoid(h2)

    if shortcut:
        y = y + x                                                # residual

    o_ref[0] = y.astype(o_ref.dtype)


def bottleneck_res_atn_mhsa(x_nchw, params, shortcut=True, softmax_bf16=True):
    B, Cin, H, W = x_nchw.shape
    N = H * W
    CS, Cin_w = params["w1"].shape
    n_qkv = params["wqkv"].shape[0]
    Cout, VS = params["w2"].shape
    nb = params["bias"].shape[0]
    assert Cin_w == Cin, "cv1 weight does not match input channels"
    assert Cout == Cin, "shortcut requires matching channel counts"
    assert params["pos"].shape == (CS, N), "pos does not match spatial size"

    # NCHW -> (B, Cin, N): pure reshape, no transpose (channel-major layout).
    x = x_nchw.reshape(B, Cin, N).astype(jnp.float32)

    kernel = functools.partial(_mhsa_bottleneck_kernel,
                               shortcut=shortcut, softmax_bf16=softmax_bf16)

    # Advisory cost hint: this launch moves ~16 KB and does <1 MFLOP, so it is
    # launch-overhead bound; the hint lets XLA schedule around it sensibly.
    flops = 2 * B * (CS * Cin * N + n_qkv * CS * N
                     + 2 * CS * N * N + VS * N * N + Cout * VS * N)
    transcendentals = B * (N * N + (CS + Cout) * N)
    bytes_accessed = (4 * (B * Cin * N + B * Cout * N + nb)
                      + 2 * (CS * Cin + n_qkv * CS + CS * N + Cout * VS))

    out = pl.pallas_call(
        kernel,
        out_shape=jax.ShapeDtypeStruct((B, Cout, N), jnp.float32),
        grid=(B,),
        in_specs=[
            pl.BlockSpec((1, Cin, N), lambda b: (b, 0, 0)),   # x, one batch/step
            pl.BlockSpec((CS, Cin), lambda b: (0, 0)),        # cv1 weight
            pl.BlockSpec((n_qkv, CS), lambda b: (0, 0)),      # fused q/k/v weight
            pl.BlockSpec((CS, N), lambda b: (0, 0)),          # rel_h + rel_w
            pl.BlockSpec((Cout, VS), lambda b: (0, 0)),       # cv2 weight
            pl.BlockSpec((nb, 1), lambda b: (0, 0)),          # packed biases
        ],
        out_specs=pl.BlockSpec((1, Cout, N), lambda b: (b, 0, 0)),
        compiler_params=pltpu.CompilerParams(
            dimension_semantics=("parallel",)),               # both TCs on v7x
        cost_estimate=pl.CostEstimate(flops=flops,
                                      transcendentals=transcendentals,
                                      bytes_accessed=bytes_accessed),
    )(x, params["w1"], params["wqkv"], params["pos"], params["w2"],
      params["bias"])

    # (B, Cout, N) -> NCHW: pure reshape, no transpose.
    return out.reshape(B, Cout, H, W)


# ----------------------------- parameter init ------------------------------

def _bn_scale_bias(key, c, eps=1e-5):
    kg, kb, km, kv = jax.random.split(key, 4)
    gamma = 1.0 + 0.1 * jax.random.normal(kg, (c,), dtype=jnp.float32)
    beta = 0.1 * jax.random.normal(kb, (c,), dtype=jnp.float32)
    mean = 0.1 * jax.random.normal(km, (c,), dtype=jnp.float32)
    var = jax.random.uniform(kv, (c,), minval=0.5, maxval=1.5, dtype=jnp.float32)
    scale = gamma / jnp.sqrt(var + eps)
    bias = beta - mean * scale
    return scale, bias


def init_params(key, n_dims, size):
    """Build BN-folded, slot-padded parameters for the Pallas kernel."""
    C = n_dims // 2
    CS = _round_up8(C)          # q/k slot rows and cv1 output rows
    VS = _round_up8(C + 1)      # v slot rows (row 0 = softmax "ones" row)
    H = W = size
    N = H * W
    ks = jax.random.split(key, 10)

    def pad2(w, rows, cols):
        return jnp.pad(w, ((0, rows - w.shape[0]), (0, cols - w.shape[1])))

    # cv1: Conv2d(n_dims, C, 1, bias=False) + BN (scale folded), rows -> CS.
    w1 = 0.2 * jax.random.normal(ks[0], (C, n_dims), dtype=jnp.float32)
    s1, b1 = _bn_scale_bias(ks[1], C)
    w1 = pad2(w1 * s1[:, None], CS, n_dims)
    b1 = jnp.pad(b1, (0, CS - C))

    # query / key / value 1x1 convs (with bias), fused + 8-aligned slots.
    wq = 0.2 * jax.random.normal(ks[2], (C, C), dtype=jnp.float32)
    bq = 0.1 * jax.random.normal(ks[3], (C,), dtype=jnp.float32)
    wk = 0.2 * jax.random.normal(ks[4], (C, C), dtype=jnp.float32)
    bk = 0.1 * jax.random.normal(ks[5], (C,), dtype=jnp.float32)
    wv = 0.2 * jax.random.normal(ks[6], (C, C), dtype=jnp.float32)
    bv = 0.1 * jax.random.normal(ks[7], (C,), dtype=jnp.float32)

    wq_p, bq_p = pad2(wq, CS, CS), jnp.pad(bq, (0, CS - C))
    wk_p, bk_p = pad2(wk, CS, CS), jnp.pad(bk, (0, CS - C))
    # v slot: row 0 is the "ones" row (zero weights, bias 1.0) -> softmax denom.
    wv_p = jnp.concatenate(
        [jnp.zeros((1, CS), jnp.float32), pad2(wv, VS - 1, CS)], axis=0)
    bv_p = jnp.concatenate(
        [jnp.ones((1,), jnp.float32), jnp.pad(bv, (0, VS - 1 - C))], axis=0)

    wqkv = jnp.concatenate([wq_p, wk_p, wv_p], axis=0)     # (2CS+VS, CS)
    bqkv = jnp.concatenate([bq_p, bk_p, bv_p], axis=0)     # (2CS+VS,)

    # positional params: rel_h (C,H,1) + rel_w (C,1,W) -> (C, N), h-major /
    # w-minor flatten (matches the NCHW reshape of x), rows padded to CS.
    kh, kw = jax.random.split(ks[8])
    rel_h = jax.random.normal(kh, (C, H, 1), dtype=jnp.float32)
    rel_w = jax.random.normal(kw, (C, 1, W), dtype=jnp.float32)
    pos = jnp.pad((rel_h + rel_w).reshape(C, N), ((0, CS - C), (0, 0)))

    # cv2: Conv2d(C, n_dims, 1, bias=False) + BN folded; embedded into
    # (n_dims, VS) with column 0 (ones row) and columns > C zeroed.
    w2 = 0.2 * jax.random.normal(ks[9], (n_dims, C), dtype=jnp.float32)
    s2, b2 = _bn_scale_bias(jax.random.fold_in(key, 123), n_dims)
    w2 = jnp.pad(w2 * s2[:, None], ((0, 0), (1, VS - 1 - C)))   # (n_dims, VS)

    # Pack all per-channel biases into one column vector (8-row-aligned slots).
    bias_all = jnp.concatenate(
        [b1, bqkv, jnp.pad(b2, (0, (-n_dims) % 8))], axis=0).reshape(-1, 1)

    return dict(
        w1=w1.astype(jnp.bfloat16),
        wqkv=wqkv.astype(jnp.bfloat16),
        pos=pos.astype(jnp.bfloat16),
        w2=w2.astype(jnp.bfloat16),
        bias=bias_all.astype(jnp.float32),
    )


# ---------------------------- pure-JAX reference ---------------------------

def _reference_forward(x_nchw, params, shortcut=True):
    """Reference in the same padded parameter space (zero pads are no-ops)."""
    B, Cin, H, W = x_nchw.shape
    N = H * W
    w1 = params["w1"].astype(jnp.float32)       # (CS,     Cin)
    wqkv = params["wqkv"].astype(jnp.float32)   # (2CS+VS, CS)
    w2 = params["w2"].astype(jnp.float32)       # (Cout,   VS)
    pos = params["pos"].astype(jnp.float32)     # (CS,     N)
    CS = w1.shape[0]
    Cout, VS = w2.shape
    biases = params["bias"][:, 0]
    b1 = biases[0:CS]
    bqkv = biases[CS:3 * CS + VS]
    b2 = biases[3 * CS + VS:3 * CS + VS + Cout]

    def silu(z):
        return z * jax.nn.sigmoid(z)

    x = x_nchw.reshape(B, Cin, N).astype(jnp.float32)
    x1 = silu(jnp.einsum("oc,bcn->bon", w1, x) + b1[None, :, None])
    qkv = jnp.einsum("oc,bcn->bon", wqkv, x1) + bqkv[None, :, None]
    q, k = qkv[:, 0:CS], qkv[:, CS:2 * CS]
    vslot = qkv[:, 2 * CS:2 * CS + VS]          # row 0 = ones (killed by w2 col 0)
    cc = jnp.einsum("bci,bcj->bij", q, k)
    cp = jnp.einsum("ci,bcj->bij", pos, q)
    attn = jax.nn.softmax(cc + cp, axis=-1)
    out = jnp.einsum("bcj,bij->bci", vslot, attn)
    y = silu(jnp.einsum("oc,bcn->bon", w2, out) + b2[None, :, None])
    if shortcut:
        y = y + x
    return y.reshape(B, Cout, H, W)


if __name__ == "__main__":
    key = jax.random.PRNGKey(0)
    kx, kp = jax.random.split(key)

    B, n_dims, size = 2, 4, 16                 # x: (2, 4, 16, 16); C = 2, N = 256
    x = jax.random.normal(kx, (B, n_dims, size, size), dtype=jnp.float32)
    params = init_params(kp, n_dims, size)

    fwd = jax.jit(functools.partial(bottleneck_res_atn_mhsa, shortcut=True))
    out = fwd(x, params)
    jax.block_until_ready(out)

    assert out.shape == (B, n_dims, size, size)
    assert bool(jnp.all(jnp.isfinite(out)))

    ref = _reference_forward(x, params, shortcut=True)
    max_err = float(jnp.max(jnp.abs(out - ref)))
    assert max_err < 5e-2, f"max abs error vs reference: {max_err}"

    print("KERNEL_OK")
</pallas_src>

<mosaic_0001>
module attributes {stable_mosaic.version = 11 : i64} {
  func.func @_mhsa_bottleneck_kernel(%arg0: i32, %arg1: memref<1x4x256xf32, #tpu.memory_space<vmem>>, %arg2: memref<8x4xbf16, #tpu.memory_space<vmem>>, %arg3: memref<24x8xbf16, #tpu.memory_space<vmem>>, %arg4: memref<8x256xbf16, #tpu.memory_space<vmem>>, %arg5: memref<4x8xbf16, #tpu.memory_space<vmem>>, %arg6: memref<40x1xf32, #tpu.memory_space<vmem>>, %arg7: memref<1x4x256xf32, #tpu.memory_space<vmem>>) attributes {dimension_semantics = [#tpu.dimension_semantics<parallel>], iteration_bounds = array<i64: 2>, scalar_prefetch = 0 : i64, scratch_operands = 0 : i64, tpu.core_type = #tpu.core_type<tc>, window_params = [{transform_indices = @transform_0, window_bounds = array<i64: 1, 4, 256>}, {pipeline_mode = #tpu.pipeline_mode<synchronous>, transform_indices = @transform_1, window_bounds = array<i64: 8, 4>}, {pipeline_mode = #tpu.pipeline_mode<synchronous>, transform_indices = @transform_2, window_bounds = array<i64: 24, 8>}, {pipeline_mode = #tpu.pipeline_mode<synchronous>, transform_indices = @transform_3, window_bounds = array<i64: 8, 256>}, {pipeline_mode = #tpu.pipeline_mode<synchronous>, transform_indices = @transform_4, window_bounds = array<i64: 4, 8>}, {pipeline_mode = #tpu.pipeline_mode<synchronous>, transform_indices = @transform_5, window_bounds = array<i64: 40, 1>}, {transform_indices = @transform_6, window_bounds = array<i64: 1, 4, 256>}]} {
    %c0 = arith.constant 0 : index
    %c0_0 = arith.constant 0 : index
    %c0_1 = arith.constant 0 : index
    %0 = vector.load %arg1[%c0, %c0_0, %c0_1] : memref<1x4x256xf32, #tpu.memory_space<vmem>>, vector<1x4x256xf32>
    %1 = vector.shape_cast %0 : vector<1x4x256xf32> to vector<4x256xf32>
    %c0_2 = arith.constant 0 : index
    %c0_3 = arith.constant 0 : index
    %2 = vector.load %arg2[%c0_2, %c0_3] : memref<8x4xbf16, #tpu.memory_space<vmem>>, vector<8x4xbf16>
    %c0_4 = arith.constant 0 : index
    %c0_5 = arith.constant 0 : index
    %3 = vector.load %arg3[%c0_4, %c0_5] : memref<24x8xbf16, #tpu.memory_space<vmem>>, vector<24x8xbf16>
    %c0_6 = arith.constant 0 : index
    %c0_7 = arith.constant 0 : index
    %4 = vector.load %arg5[%c0_6, %c0_7] : memref<4x8xbf16, #tpu.memory_space<vmem>>, vector<4x8xbf16>
    %c0_8 = arith.constant 0 : index
    %c0_9 = arith.constant 0 : index
    %5 = vector.load %arg4[%c0_8, %c0_9] : memref<8x256xbf16, #tpu.memory_space<vmem>>, vector<8x256xbf16>
    %c0_10 = arith.constant 0 : index
    %c0_11 = arith.constant 0 : index
    %6 = vector.load %arg6[%c0_10, %c0_11] : memref<40x1xf32, #tpu.memory_space<vmem>>, vector<40x1xf32>
    %7 = vector.extract_strided_slice %6 {offsets = [0, 0], sizes = [8, 1], strides = [1, 1]} : vector<40x1xf32> to vector<8x1xf32>
    %8 = vector.extract_strided_slice %6 {offsets = [8, 0], sizes = [24, 1], strides = [1, 1]} : vector<40x1xf32> to vector<24x1xf32>
    %9 = vector.extract_strided_slice %6 {offsets = [32, 0], sizes = [4, 1], strides = [1, 1]} : vector<40x1xf32> to vector<4x1xf32>
    %10 = arith.truncf %1 : vector<4x256xf32> to vector<4x256xbf16>
    %cst = arith.constant dense<0.000000e+00> : vector<8x256xf32>
    %11 = tpu.matmul %2, %10, %cst {dimension_numbers = #tpu.dot_dimension_numbers<[1], [0], [0], [1], [0, 0, 1, 1], [], []>} : vector<8x4xbf16>, vector<4x256xbf16>, vector<8x256xf32> -> vector<8x256xf32>
    %12 = vector.broadcast %7 : vector<8x1xf32> to vector<8x256xf32>
    %13 = arith.addf %11, %12 : vector<8x256xf32>
    %14 = arith.negf %13 : vector<8x256xf32>
    %15 = math.exp %14 : vector<8x256xf32>
    %cst_12 = arith.constant 1.000000e+00 : f32
    %16 = vector.broadcast %cst_12 : f32 to vector<8x256xf32>
    %17 = arith.addf %16, %15 : vector<8x256xf32>
    %18 = arith.divf %16, %17 : vector<8x256xf32>
    %19 = arith.mulf %13, %18 : vector<8x256xf32>
    %20 = arith.truncf %19 : vector<8x256xf32> to vector<8x256xbf16>
    %cst_13 = arith.constant dense<0.000000e+00> : vector<24x256xf32>
    %21 = tpu.matmul %3, %20, %cst_13 {dimension_numbers = #tpu.dot_dimension_numbers<[1], [0], [0], [1], [0, 0, 1, 1], [], []>} : vector<24x8xbf16>, vector<8x256xbf16>, vector<24x256xf32> -> vector<24x256xf32>
    %22 = vector.broadcast %8 : vector<24x1xf32> to vector<24x256xf32>
    %23 = arith.addf %21, %22 : vector<24x256xf32>
    %24 = vector.extract_strided_slice %23 {offsets = [0, 0], sizes = [16, 256], strides = [1, 1]} : vector<24x256xf32> to vector<16x256xf32>
    %25 = arith.truncf %24 : vector<16x256xf32> to vector<16x256xbf16>
    %26 = vector.extract_strided_slice %23 {offsets = [0, 0], sizes = [8, 256], strides = [1, 1]} : vector<24x256xf32> to vector<8x256xf32>
    %27 = arith.truncf %26 : vector<8x256xf32> to vector<8x256xbf16>
    %28 = tpu.concatenate %5, %27 in 0 : vector<8x256xbf16>, vector<8x256xbf16> -> vector<16x256xbf16>
    %cst_14 = arith.constant dense<0.000000e+00> : vector<256x256xf32>
    %29 = tpu.matmul %25, %28, %cst_14 {dimension_numbers = #tpu.dot_dimension_numbers<[0], [0], [1], [1], [0, 1, 1, 1], [], []>} : vector<16x256xbf16>, vector<16x256xbf16>, vector<256x256xf32> -> vector<256x256xf32>
    %cst_15 = arith.constant dense<0xFF800000> : vector<256xf32>
    %30 = vector.multi_reduction <maximumf>, %29, %cst_15 [0] : vector<256x256xf32> to vector<256xf32>
    %31 = vector.shape_cast %30 : vector<256xf32> to vector<1x256xf32>
    %32 = vector.broadcast %31 : vector<1x256xf32> to vector<256x256xf32>
    %33 = arith.subf %29, %32 : vector<256x256xf32>
    %34 = arith.truncf %33 : vector<256x256xf32> to vector<256x256xbf16>
    %35 = math.exp %34 : vector<256x256xbf16>
    %36 = vector.extract_strided_slice %23 {offsets = [16, 0], sizes = [8, 256], strides = [1, 1]} : vector<24x256xf32> to vector<8x256xf32>
    %37 = arith.truncf %36 : vector<8x256xf32> to vector<8x256xbf16>
    %cst_16 = arith.constant dense<0.000000e+00> : vector<8x256xf32>
    %38 = tpu.matmul %37, %35, %cst_16 {dimension_numbers = #tpu.dot_dimension_numbers<[1], [0], [0], [1], [0, 0, 1, 1], [], []>} : vector<8x256xbf16>, vector<256x256xbf16>, vector<8x256xf32> -> vector<8x256xf32>
    %39 = vector.extract_strided_slice %38 {offsets = [0, 0], sizes = [1, 256], strides = [1, 1]} : vector<8x256xf32> to vector<1x256xf32>
    %40 = tpu.reciprocal %39 {approx = true} : vector<1x256xf32> -> vector<1x256xf32>
    %41 = vector.broadcast %40 : vector<1x256xf32> to vector<8x256xf32>
    %42 = arith.mulf %38, %41 : vector<8x256xf32>
    %43 = arith.truncf %42 : vector<8x256xf32> to vector<8x256xbf16>
    %cst_17 = arith.constant dense<0.000000e+00> : vector<4x256xf32>
    %44 = tpu.matmul %4, %43, %cst_17 {dimension_numbers = #tpu.dot_dimension_numbers<[1], [0], [0], [1], [0, 0, 1, 1], [], []>} : vector<4x8xbf16>, vector<8x256xbf16>, vector<4x256xf32> -> vector<4x256xf32>
    %45 = vector.broadcast %9 : vector<4x1xf32> to vector<4x256xf32>
    %46 = arith.addf %44, %45 : vector<4x256xf32>
    %47 = arith.negf %46 : vector<4x256xf32>
    %48 = math.exp %47 : vector<4x256xf32>
    %cst_18 = arith.constant 1.000000e+00 : f32
    %49 = vector.broadcast %cst_18 : f32 to vector<4x256xf32>
    %50 = arith.addf %49, %48 : vector<4x256xf32>
    %51 = arith.divf %49, %50 : vector<4x256xf32>
    %52 = arith.mulf %46, %51 : vector<4x256xf32>
    %53 = arith.addf %52, %1 : vector<4x256xf32>
    %c0_19 = arith.constant 0 : index
    %c0_20 = arith.constant 0 : index
    %c0_21 = arith.constant 0 : index
    %54 = vector.load %arg7[%c0_19, %c0_20, %c0_21] : memref<1x4x256xf32, #tpu.memory_space<vmem>>, vector<1x4x256xf32>
    %55 = vector.shape_cast %54 : vector<1x4x256xf32> to vector<4x256xf32>
    %56 = vector.shape_cast %53 : vector<4x256xf32> to vector<1x4x256xf32>
    tpu.vector_store %arg7[%c0_19, %c0_20, %c0_21], %56 {strides = array<i32>} : memref<1x4x256xf32, #tpu.memory_space<vmem>>, vector<1x4x256xf32>,
    return
  }
  func.func @transform_0(%arg0: i32) -> (i32, i32, i32) {
    %c0_i32 = arith.constant 0 : i32
    %c0_i32_0 = arith.constant 0 : i32
    %c0_i32_1 = arith.constant 0 : i32
    return %arg0, %c0_i32, %c0_i32_0 : i32, i32, i32
  }
  func.func @transform_1(%arg0: i32) -> (i32, i32) {
    %c0_i32 = arith.constant 0 : i32
    %c0_i32_0 = arith.constant 0 : i32
    %c0_i32_1 = arith.constant 0 : i32
    return %c0_i32, %c0_i32_0 : i32, i32
  }
  func.func @transform_2(%arg0: i32) -> (i32, i32) {
    %c0_i32 = arith.constant 0 : i32
    %c0_i32_0 = arith.constant 0 : i32
    %c0_i32_1 = arith.constant 0 : i32
    return %c0_i32, %c0_i32_0 : i32, i32
  }
  func.func @transform_3(%arg0: i32) -> (i32, i32) {
    %c0_i32 = arith.constant 0 : i32
    %c0_i32_0 = arith.constant 0 : i32
    %c0_i32_1 = arith.constant 0 : i32
    return %c0_i32, %c0_i32_0 : i32, i32
  }
  func.func @transform_4(%arg0: i32) -> (i32, i32) {
    %c0_i32 = arith.constant 0 : i32
    %c0_i32_0 = arith.constant 0 : i32
    %c0_i32_1 = arith.constant 0 : i32
    return %c0_i32, %c0_i32_0 : i32, i32
  }
  func.func @transform_5(%arg0: i32) -> (i32, i32) {
    %c0_i32 = arith.constant 0 : i32
    %c0_i32_0 = arith.constant 0 : i32
    %c0_i32_1 = arith.constant 0 : i32
    return %c0_i32, %c0_i32_0 : i32, i32
  }
  func.func @transform_6(%arg0: i32) -> (i32, i32, i32) {
    %c0_i32 = arith.constant 0 : i32
    %c0_i32_0 = arith.constant 0 : i32
    %c0_i32_1 = arith.constant 0 : i32
    return %arg0, %c0_i32, %c0_i32_0 : i32, i32, i32
  }
}

</mosaic_0001>

<llo_original>
// kernel: bottleneck_res_atn_mhsa.1
$region0: #{bottleneck_res_atn_mhsa.1}
  #allocation0 [shape = 'u32[]', space=smem, size = 0x4, offset = 0x4, fixed_abs, tag = 'smem constant byte address 0x4 - core index']
  #allocation1 [shape = 'u32[72,128]{1,0:T(1,128)}', space=vmem, size = 0x9000, scoped, tag = 'internal scratch']
  %s0 = inlined_call_operand.vmem [shape: f32[2,4,256], index: 0, kind: input, shape index: {}]
  %s1 = inlined_call_operand.vmem [shape: bf16[8,4], index: 1, kind: input, shape index: {}]
  %s2 = inlined_call_operand.vmem [shape: bf16[24,8], index: 2, kind: input, shape index: {}]
  %s3 = inlined_call_operand.vmem [shape: bf16[8,256], index: 3, kind: input, shape index: {}]
  %s4 = inlined_call_operand.vmem [shape: bf16[4,8], index: 4, kind: input, shape index: {}]
  %s5 = inlined_call_operand.vmem [shape: f32[40,1], index: 5, kind: input, shape index: {}]
  %s6 = inlined_call_operand.vmem [shape: f32[2,4,256], index: 6, kind: output, shape index: {}]
  %s7 = sld [smem:[#allocation0]]
  $region57: #{bottleneck_res_atn_mhsa.1} parent=0
    _
  %s9 = ssub.s32 1, %s7
  %s10 = scalar_select 0, %s9, %s7
  loop: start=0, step=1, limit=4
  $region2: #{bottleneck_res_atn_mhsa.1} parent=0 // loop_pre_header
    _
  $region3: #{bottleneck_res_atn_mhsa.1} parent=0 // loop_header
    %s12 = sphi 0, %s16
    %p13 = scmp.ge.s32.totalorder %s12, 4
    %s22 = sphi 0, %s24
    %s25 = sphi 0, %s22
    %s26 = sphi 0, %s25
    %s42 = sphi 0, %s26
    %s46 = sphi 0, %s46
    %s48 = sphi 0, %s46
    %s49 = sphi 0, %s48
    %s63 = sphi 0, %s49
    %s67 = sphi 0, %s67
    %s69 = sphi 0, %s67
    %s70 = sphi 0, %s69
    %s84 = sphi 0, %s70
    %s88 = sphi 0, %s88
    %s90 = sphi 0, %s88
    %s91 = sphi 0, %s90
    %s105 = sphi 0, %s91
    %s109 = sphi 0, %s109
    %s111 = sphi 0, %s109
    %s112 = sphi 0, %s111
    %s126 = sphi 0, %s112
    %s130 = sphi 0, %s130
    %s132 = sphi 0, %s130
    %s133 = sphi 0, %s132
    %s147 = sphi 0, %s133
    %s153 = sphi 0, %s155
    %s156 = sphi 0, %s153
    %s157 = sphi 0, %s156
    %s173 = sphi 0, %s157
  $region4: #{bottleneck_res_atn_mhsa.1} parent=0 // loop_header_branch
    %15 = sbr.rel (%p13) target = $region8
  $region5: #{bottleneck_res_atn_mhsa.1} parent=0 // loop_body
    %s17 = ssub.s32 %s12, 1
    %s18 = ssub.s32 %s12, 2
    %s19 = sadd.s32 %s12, 1
    %s20 = ssub.s32 %s12, %s19
    %p21 = scmp.eq.s32.totalorder %s20, 0
    %s23 = sadd.s32 %s22, 1
    %s24 = scalar_select %p21, %s22, %s23
    %p27 = pneg %p21
    %p28 = scmp.eq.s32.totalorder %s12, 1
    %p29 = por %p27, %p28
    %p30 = scmp.ne.s32.totalorder %s22, %s25
    %p31 = scmp.eq.s32.totalorder %s12, 0
    %p32 = por %p30, %p31
    %p33 = scmp.ne.s32.totalorder %s22, %s25
    %p34 = scmp.eq.s32.totalorder %s17, 1
    %p35 = por %p33, %p34
    %p36 = scmp.ne.s32.totalorder %s25, %s26
    %p37 = scmp.eq.s32.totalorder %s17, 0
    %p38 = por %p36, %p37
    %p39 = scmp.ne.s32.totalorder %s25, %s26
    %p40 = scmp.eq.s32.totalorder %s18, 1
    %p41 = por %p39, %p40
    %p43 = scmp.ne.s32.totalorder %s26, %s42
    %p44 = scmp.eq.s32.totalorder %s18, 0
    %p45 = por %p43, %p44
    %s47 = sadd.s32 %s46, 1
    %p50 = scmp.eq.s32.totalorder %s12, 1
    %p51 = scmp.ne.s32.totalorder %s46, %s48
    %p52 = scmp.eq.s32.totalorder %s12, 0
    %p53 = por %p51, %p52
    %p54 = scmp.ne.s32.totalorder %s46, %s48
    %p55 = scmp.eq.s32.totalorder %s17, 1
    %p56 = por %p54, %p55
    %p57 = scmp.ne.s32.totalorder %s48, %s49
    %p58 = scmp.eq.s32.totalorder %s17, 0
    %p59 = por %p57, %p58
    %p60 = scmp.ne.s32.totalorder %s48, %s49
    %p61 = scmp.eq.s32.totalorder %s18, 1
    %p62 = por %p60, %p61
    %p64 = scmp.ne.s32.totalorder %s49, %s63
    %p65 = scmp.eq.s32.totalorder %s18, 0
    %p66 = por %p64, %p65
    %s68 = sadd.s32 %s67, 1
    %p71 = scmp.eq.s32.totalorder %s12, 1
    %p72 = scmp.ne.s32.totalorder %s67, %s69
    %p73 = scmp.eq.s32.totalorder %s12, 0
    %p74 = por %p72, %p73
    %p75 = scmp.ne.s32.totalorder %s67, %s69
    %p76 = scmp.eq.s32.totalorder %s17, 1
    %p77 = por %p75, %p76
    %p78 = scmp.ne.s32.totalorder %s69, %s70
    %p79 = scmp.eq.s32.totalorder %s17, 0
    %p80 = por %p78, %p79
    %p81 = scmp.ne.s32.totalorder %s69, %s70
    %p82 = scmp.eq.s32.totalorder %s18, 1
    %p83 = por %p81, %p82
    %p85 = scmp.ne.s32.totalorder %s70, %s84
    %p86 = scmp.eq.s32.totalorder %s18, 0
    %p87 = por %p85, %p86
    %s89 = sadd.s32 %s88, 1
    %p92 = scmp.eq.s32.totalorder %s12, 1
    %p93 = scmp.ne.s32.totalorder %s88, %s90
    %p94 = scmp.eq.s32.totalorder %s12, 0
    %p95 = por %p93, %p94
    %p96 = scmp.ne.s32.totalorder %s88, %s90
    %p97 = scmp.eq.s32.totalorder %s17, 1
    %p98 = por %p96, %p97
    %p99 = scmp.ne.s32.totalorder %s90, %s91
    %p100 = scmp.eq.s32.totalorder %s17, 0
    %p101 = por %p99, %p100
    %p102 = scmp.ne.s32.totalorder %s90, %s91
    %p103 = scmp.eq.s32.totalorder %s18, 1
    %p104 = por %p102, %p103
    %p106 = scmp.ne.s32.totalorder %s91, %s105
    %p107 = scmp.eq.s32.totalorder %s18, 0
    %p108 = por %p106, %p107
    %s110 = sadd.s32 %s109, 1
    %p113 = scmp.eq.s32.totalorder %s12, 1
    %p114 = scmp.ne.s32.totalorder %s109, %s111
    %p115 = scmp.eq.s32.totalorder %s12, 0
    %p116 = por %p114, %p115
    %p117 = scmp.ne.s32.totalorder %s109, %s111
    %p118 = scmp.eq.s32.totalorder %s17, 1
    %p119 = por %p117, %p118
    %p120 = scmp.ne.s32.totalorder %s111, %s112
    %p121 = scmp.eq.s32.totalorder %s17, 0
    %p122 = por %p120, %p121
    %p123 = scmp.ne.s32.totalorder %s111, %s112
    %p124 = scmp.eq.s32.totalorder %s18, 1
    %p125 = por %p123, %p124
    %p127 = scmp.ne.s32.totalorder %s112, %s126
    %p128 = scmp.eq.s32.totalorder %s18, 0
    %p129 = por %p127, %p128
    %s131 = sadd.s32 %s130, 1
    %p134 = scmp.eq.s32.totalorder %s12, 1
    %p135 = scmp.ne.s32.totalorder %s130, %s132
    %p136 = scmp.eq.s32.totalorder %s12, 0
    %p137 = por %p135, %p136
    %p138 = scmp.ne.s32.totalorder %s130, %s132
    %p139 = scmp.eq.s32.totalorder %s17, 1
    %p140 = por %p138, %p139
    %p141 = scmp.ne.s32.totalorder %s132, %s133
    %p142 = scmp.eq.s32.totalorder %s17, 0
    %p143 = por %p141, %p142
    %p144 = scmp.ne.s32.totalorder %s132, %s133
    %p145 = scmp.eq.s32.totalorder %s18, 1
    %p146 = por %p144, %p145
    %p148 = scmp.ne.s32.totalorder %s133, %s147
    %p149 = scmp.eq.s32.totalorder %s18, 0
    %p150 = por %p148, %p149
    %s151 = ssub.s32 %s12, %s19
    %p152 = scmp.eq.s32.totalorder %s151, 0
    %s154 = sadd.s32 %s153, 1
    %s155 = scalar_select %p152, %s153, %s154
    %p158 = pneg %p152
    %p159 = scmp.eq.s32.totalorder %s12, 1
    %p160 = por %p158, %p159
    %p161 = scmp.ne.s32.totalorder %s153, %s156
    %p162 = scmp.eq.s32.totalorder %s12, 0
    %p163 = por %p161, %p162
    %p164 = scmp.ne.s32.totalorder %s153, %s156
    %p165 = scmp.eq.s32.totalorder %s17, 1
    %p166 = por %p164, %p165
    %p167 = scmp.ne.s32.totalorder %s156, %s157
    %p168 = scmp.eq.s32.totalorder %s17, 0
    %p169 = por %p167, %p168
    %p170 = scmp.ne.s32.totalorder %s156, %s157
    %p171 = scmp.eq.s32.totalorder %s18, 1
    %p172 = por %p170, %p171
    %p174 = scmp.ne.s32.totalorder %s157, %s173
    %p175 = scmp.eq.s32.totalorder %s18, 0
    %p176 = por %p174, %p175
    %p177 = scmp.le.s32.totalorder 1, %s12
    %p178 = scmp.lt.s32.totalorder %s12, 3
    %p179 = pnand %p177, %p178
    %p180 = pneg %p179
    // Predicated region
    $region9: #{bottleneck_res_atn_mhsa.1} parent=5 // pred_check
      _
    $region10: #{bottleneck_res_atn_mhsa.1} parent=5 // pred_check_branch
      %182 = sbr.rel (%p179) target = $region12
    $region11: #{bottleneck_res_atn_mhsa.1} parent=5 // pred_region
      %s183 = ssub.s32 %s12, 1
      // Predicated region
      $region13: #{bottleneck_res_atn_mhsa.1} parent=11 // pred_check
        %p184 = pneg %p59
      $region14: #{bottleneck_res_atn_mhsa.1} parent=11 // pred_check_branch
        %186 = sbr.rel (%p184) target = $region16
      $region15: #{bottleneck_res_atn_mhsa.1} parent=11 // pred_region
        _
      $region16: #{bottleneck_res_atn_mhsa.1} parent=11 // pred_fallthru
        _
      // Predicated region
      $region17: #{bottleneck_res_atn_mhsa.1} parent=11 // pred_check
        %p187 = pneg %p80
      $region18: #{bottleneck_res_atn_mhsa.1} parent=11 // pred_check_branch
        %189 = sbr.rel (%p187) target = $region20
      $region19: #{bottleneck_res_atn_mhsa.1} parent=11 // pred_region
        _
      $region20: #{bottleneck_res_atn_mhsa.1} parent=11 // pred_fallthru
        _
      // Predicated region
      $region21: #{bottleneck_res_atn_mhsa.1} parent=11 // pred_check
        %p190 = pneg %p101
      $region22: #{bottleneck_res_atn_mhsa.1} parent=11 // pred_check_branch
        %192 = sbr.rel (%p190) target = $region24
      $region23: #{bottleneck_res_atn_mhsa.1} parent=11 // pred_region
        _
      $region24: #{bottleneck_res_atn_mhsa.1} parent=11 // pred_fallthru
        _
      // Predicated region
      $region25: #{bottleneck_res_atn_mhsa.1} parent=11 // pred_check
        %p193 = pneg %p122
      $region26: #{bottleneck_res_atn_mhsa.1} parent=11 // pred_check_branch
        %195 = sbr.rel (%p193) target = $region28
      $region27: #{bottleneck_res_atn_mhsa.1} parent=11 // pred_region
        _
      $region28: #{bottleneck_res_atn_mhsa.1} parent=11 // pred_fallthru
        _
      // Predicated region
      $region29: #{bottleneck_res_atn_mhsa.1} parent=11 // pred_check
        %p196 = pneg %p143
      $region30: #{bottleneck_res_atn_mhsa.1} parent=11 // pred_check_branch
        %198 = sbr.rel (%p196) target = $region32
      $region31: #{bottleneck_res_atn_mhsa.1} parent=11 // pred_region
        _
      $region32: #{bottleneck_res_atn_mhsa.1} parent=11 // pred_fallthru
        _
    $region12: #{bottleneck_res_atn_mhsa.1} parent=5 // pred_fallthru
      _
    %p199 = scmp.lt.s32.totalorder %s12, 2
    // Predicated region
    $region33: #{bottleneck_res_atn_mhsa.1} parent=5 // pred_check
      %p200 = pneg %p199
    $region34: #{bottleneck_res_atn_mhsa.1} parent=5 // pred_check_branch
      %202 = sbr.rel (%p200) target = $region36
    $region35: #{bottleneck_res_atn_mhsa.1} parent=5 // pred_region
      // Predicated region
      $region37: #{bottleneck_res_atn_mhsa.1} parent=35 // pred_check
        %p203 = pneg %p32
      $region38: #{bottleneck_res_atn_mhsa.1} parent=35 // pred_check_branch
        %205 = sbr.rel (%p203) target = $region40
      $region39: #{bottleneck_res_atn_mhsa.1} parent=35 // pred_region
        %p206 = scmp.lt.s32.totalorder %s12, 1
        %s207 = scalar_select %p206, %s12, 1
        %s208 = smul.addr %s207, 2
        %s209 = smul.addr %s208, 4
        %s210 = scalar_lea.vmem %s0, %s209
      $region40: #{bottleneck_res_atn_mhsa.1} parent=35 // pred_fallthru
        _
    $region36: #{bottleneck_res_atn_mhsa.1} parent=5 // pred_fallthru
      _
    %p211 = scmp.le.s32.totalorder 1, %s12
    %p212 = scmp.lt.s32.totalorder %s12, 3
    %p213 = pnand %p211, %p212
    %p214 = pneg %p213
    // Predicated region
    $region41: #{bottleneck_res_atn_mhsa.1} parent=5 // pred_check
      _
    $region42: #{bottleneck_res_atn_mhsa.1} parent=5 // pred_check_branch
      %216 = sbr.rel (%p213) target = $region44
    $region43: #{bottleneck_res_atn_mhsa.1} parent=5 // pred_region
      %s217 = ssub.s32 %s12, 1
      %p218 = scmp.lt.s32.totalorder %s17, 1
      %s219 = scalar_select %p218, %s17, 1
      %s220 = smul.addr %s219, 2
      %s221 = smul.addr %s220, 4
      %s222 = scalar_lea.vmem %s0, %s221
      %p223 = pneg %p38
      %p224 = pneg %p35
      %p225 = pneg %p59
      %p226 = pneg %p56
      %p227 = pneg %p80
      %p228 = pneg %p77
      %p229 = pneg %p101
      %p230 = pneg %p98
      %p231 = pneg %p122
      %p232 = pneg %p119
      %p233 = pneg %p143
      %p234 = pneg %p140
      %p235 = pneg %p169
      %p236 = pneg %p166
      %p237 = scmp.lt.s32.totalorder %s17, 1
      %s238 = scalar_select %p237, %s17, 1
      %s239 = smul.addr %s238, 2
      %s240 = smul.addr %s239, 4
      %s241 = scalar_lea.vmem %s6, %s240
      %p242 = scmp.lt.s32.totalorder %s17, 1
      %s243 = scalar_select %p242, %s17, 1
      %s244 = smul.addr %s243, 2
      %s245 = smul.addr %s244, 4
      %s246 = scalar_lea.vmem %s0, %s245
      %p247 = scmp.lt.s32.totalorder %s17, 1
      %s248 = scalar_select %p247, %s17, 1
      %s249 = smul.addr %s248, 2
      %s250 = smul.addr %s249, 4
      %s251 = scalar_lea.vmem %s6, %s250
      %v253 = vld [vmem:[%s246] sm:$0xff]
      %v254 = vld [vmem:[%s1] sm:$0xf]
      %v255 = vld [vmem:[%s2] sm:$0xf]
      %v256 = vld [vmem:[%s2 + $0x4] sm:$0xf]
      %v257 = vld [vmem:[%s2 + $0x8] sm:$0xf]
      %v258 = vld [vmem:[%s4] sm:$0x3]
      %v259 = vld [vmem:[%s3] sm:$0xff]
      %v260 = vld [vmem:[%s5] sm:$0xff]
      %v261 = vld [vmem:[%s5 + $0x8] sm:$0xff]
      %v262 = vld [vmem:[%s5 + $0x10] sm:$0xff]
      %v263 = vld [vmem:[%s5 + $0x18] sm:$0xff]
      %v264 = vld [vmem:[%s5 + $0x20] sm:$0xff]
      %266 = vst [vmem:[#allocation1] ss:$2 sm:$0xff] %v253
      %v267 = vld.sshfl [vmem:[#allocation1] sm:$0xff pattern:$0x75316420]
      %v268 = vld.sshfl [vmem:[#allocation1 + $0x8] sm:$0xff pattern:$0x75316420]
      %v271 = vpack.c.bf16 %v267, %v267
      %v272 = vpack.c.bf16 %v268, %v268
      %274 = vset.pattern.permute.xlu0 0
      %275 = vperm.xlu0 %274, %v260
      %v276 = vpop.permute.xlu0 %275
      %vm278 = vcmask 31744
      %v280 = vsel %vm278, %v254, 0
      %vm282 = vcmask 1041408
      %v284 = vsel %vm282, %v271, 0
      %v287 = vsel %vm282, %v272, 0
      %289 = vmatpush.bf16.msra.mxu0 0
      %290 = vmatpush.bf16.msra.mxu0 0
      %291 = vmatpush.bf16.msra.mxu0 0
      %292 = vmatpush.bf16.msra.mxu0 0
      %293 = vmatpush.bf16.msra.mxu0 0
      %294 = vmatpush.bf16.msra.mxu0 0
      %295 = vmatpush.bf16.msra.mxu0 0
      %296 = vmatpush.bf16.msra.mxu0 %v284
      %297 = vmatmul.bf16.gmra.mxu0 %v280
      %v298 = vpop.f32.mrf.mxu0
      %v299 = vadd.f32 %v276, %v298
      %v300 = vpop.f32.mrf.mxu0
      %301 = vdwg.mxu0
      %302 = vmatpush.bf16.msra.mxu0 0
      %303 = vmatpush.bf16.msra.mxu0 0
      %304 = vmatpush.bf16.msra.mxu0 0
      %305 = vmatpush.bf16.msra.mxu0 0
      %306 = vmatpush.bf16.msra.mxu0 0
      %307 = vmatpush.bf16.msra.mxu0 0
      %308 = vmatpush.bf16.msra.mxu0 0
      %309 = vmatpush.bf16.msra.mxu0 %v287
      %310 = vmatmul.bf16.gmra.mxu0 %v280
      %v311 = vpop.f32.mrf.mxu0
      %v312 = vadd.f32 %v276, %v311
      %v313 = vpop.f32.mrf.mxu0
      %314 = vdwg.mxu0
      %v315 = vxor.u32 %v299, 2147483648
      %v316 = vxor.u32 %v312, 2147483648
      %v317 = vmul.f32 %v315, 1.442695
      %v318 = vpow.pop %v317
      %v319 = vmul.f32 %v316, 1.442695
      %v320 = vpow.pop %v319
      %v321 = vadd.f32 %v318, 1.0
      %v322 = vadd.f32 %v320, 1.0
      %v323 = vrcp.pop %v321
      %v324 = vmul.f32 %v321, %v323
      %v325 = vsub.f32 1.0, %v324
      %v326 = vmul.f32 %v323, %v325
      %v327 = vadd.f32 %v323, %v326
      %vm328 = vweird.f32 %v321
      %vm329 = vweird.f32 %v323
      %vm330 = vmor %vm328, %vm329
      %v331 = vsel %vm330, %v323, %v327
      %v332 = vand.u32 2147483647, %v321
      %vm333 = vcmp.eq.f32.partialorder %v332, 8.507059e+37
      %v334 = vand.u32 %v321, 2147483648
      %v335 = vor.u32 1.1754944e-38, %v334
      %v336 = vsel %vm333, %v335, %v331
      %v337 = vmul.f32 1.0, %v336
      %v338 = vrcp.pop %v322
      %v339 = vmul.f32 %v322, %v338
      %v340 = vsub.f32 1.0, %v339
      %v341 = vmul.f32 %v338, %v340
      %v342 = vadd.f32 %v338, %v341
      %vm343 = vweird.f32 %v322
      %vm344 = vweird.f32 %v338
      %vm345 = vmor %vm343, %vm344
      %v346 = vsel %vm345, %v338, %v342
      %v347 = vand.u32 2147483647, %v322
      %vm348 = vcmp.eq.f32.partialorder %v347, 8.507059e+37
      %v349 = vand.u32 %v322, 2147483648
      %v350 = vor.u32 1.1754944e-38, %v349
      %v351 = vsel %vm348, %v350, %v346
      %v352 = vmul.f32 1.0, %v351
      %v353 = vmul.f32 %v299, %v337
      %v354 = vmul.f32 %v312, %v352
      %v355 = vpack.c.bf16 %v353, %v353
      %v356 = vpack.c.bf16 %v354, %v354
      %358 = vset.pattern.permute.xlu0 0
      %359 = vperm.xlu0 %358, %v261
      %v360 = vpop.permute.xlu0 %359
      %363 = vset.pattern.permute.xlu0 0
      %364 = vperm.xlu0 %363, %v262
      %v365 = vpop.permute.xlu0 %364
      %368 = vset.pattern.permute.xlu0 0
      %369 = vperm.xlu0 %368, %v263
      %v370 = vpop.permute.xlu0 %369
      %v375 = vunpack.c.l.b16 %v255
      %v376 = vunpack.c.l.b16 %v256
      %v377 = vunpack.c.l.b16 %v257
      %v378 = vpack.c.b16 %v376, %v375
      %v379 = vpack.c.b16 %v377, %v377
      %vm380 = vcmask 64512
      %v382 = vsel %vm380, %v378, 0
      %v385 = vsel %vm380, %v379, 0
      %vm387 = vcmask 1043456
      %v389 = vsel %vm387, %v355, 0
      %v392 = vsel %vm387, %v356, 0
      %394 = vmatpush.bf16.msra.mxu0 0
      %395 = vmatpush.bf16.msra.mxu0 0
      %396 = vmatpush.bf16.msra.mxu0 0
      %397 = vmatpush.bf16.msra.mxu0 0
      %398 = vmatpush.bf16.msra.mxu0 0
      %399 = vmatpush.bf16.msra.mxu0 0
      %400 = vmatpush.bf16.msra.mxu0 0
      %401 = vmatpush.bf16.msra.mxu0 %v389
      %402 = vmatmul.bf16.gmra.mxu0 %v382
      %v403 = vpop.f32.mrf.mxu0
      %v404 = vadd.f32 %v360, %v403
      %v405 = vpop.f32.mrf.mxu0
      %v406 = vadd.f32 %v365, %v405
      %407 = vmatmul.bf16.gmra.mxu0 %v385
      %v408 = vpop.f32.mrf.mxu0
      %v409 = vadd.f32 %v370, %v408
      %v410 = vpop.f32.mrf.mxu0
      %411 = vdwg.mxu0
      %412 = vmatpush.bf16.msra.mxu0 0
      %413 = vmatpush.bf16.msra.mxu0 0
      %414 = vmatpush.bf16.msra.mxu0 0
      %415 = vmatpush.bf16.msra.mxu0 0
      %416 = vmatpush.bf16.msra.mxu0 0
      %417 = vmatpush.bf16.msra.mxu0 0
      %418 = vmatpush.bf16.msra.mxu0 0
      %419 = vmatpush.bf16.msra.mxu0 %v392
      %420 = vmatmul.bf16.gmra.mxu0 %v382
      %v421 = vpop.f32.mrf.mxu0
      %v422 = vadd.f32 %v360, %v421
      %v423 = vpop.f32.mrf.mxu0
      %v424 = vadd.f32 %v365, %v423
      %425 = vmatmul.bf16.gmra.mxu0 %v385
      %v426 = vpop.f32.mrf.mxu0
      %v427 = vadd.f32 %v370, %v426
      %v428 = vpop.f32.mrf.mxu0
      %429 = vdwg.mxu0
      %v430 = vpack.c.bf16 %v406, %v404
      %v431 = vpack.c.bf16 %v424, %v422
      %v432 = vpack.c.bf16 %v422, %v404
      %v434 = vunpack.c.l.b16 %v259
      %v435 = vunpack.c.h.b16 %v259
      %v436 = vpack.c.b16 %v434, %v434
      %v437 = vpack.c.b16 %v435, %v435
      %v439 = vunpack.c.l.b16 %v432
      %v440 = vunpack.c.h.b16 %v432
      %v441 = vpack.c.b16 %v439, %v439
      %v442 = vpack.c.b16 %v440, %v440
      %v445 = vsel %vm387, %v436, %v441
      %v449 = vsel %vm387, %v437, %v442
      %451 = vxpose.binary.xlu0.c.b16.start [1/16] %v431, %v430, 128
      %452 = vxpose.binary.xlu0.c.b16.cont [2/16] 0, 0, 128
      %453 = vxpose.binary.xlu0.c.b16.cont [3/16] 0, 0, 128
      %454 = vxpose.binary.xlu0.c.b16.cont [4/16] 0, 0, 128
      %455 = vxpose.binary.xlu0.c.b16.cont [5/16] 0, 0, 128
      %456 = vxpose.binary.xlu0.c.b16.cont [6/16] 0, 0, 128
      %457 = vxpose.binary.xlu0.c.b16.cont [7/16] 0, 0, 128
      %458 = vxpose.binary.xlu0.c.b16.end [8/16] 0, 0, 128
      %v459 = vpop.trf.xlu0
      %v460 = vpop.trf.xlu0
      %v461 = vpop.trf.xlu0
      %v462 = vpop.trf.xlu0
      %v463 = vpop.trf.xlu0
      %v464 = vpop.trf.xlu0
      %v465 = vpop.trf.xlu0
      %v466 = vpop.trf.xlu0
      %v467 = vpop.trf.xlu0
      %v468 = vpop.trf.xlu0
      %v469 = vpop.trf.xlu0
      %v470 = vpop.trf.xlu0
      %v471 = vpop.trf.xlu0
      %v472 = vpop.trf.xlu0
      %v473 = vpop.trf.xlu0
      %v474 = vpop.trf.xlu0
      %vm475 = vcmask 130048
      %v477 = vsel %vm475, %v459, 0
      %v480 = vsel %vm475, %v461, 0
      %v483 = vsel %vm475, %v463, 0
      %v486 = vsel %vm475, %v465, 0
      %v489 = vsel %vm475, %v467, 0
      %v492 = vsel %vm475, %v469, 0
      %v495 = vsel %vm475, %v471, 0
      %v498 = vsel %vm475, %v473, 0
      %v501 = vsel %vm475, %v460, 0
      %v504 = vsel %vm475, %v462, 0
      %v507 = vsel %vm475, %v464, 0
      %v510 = vsel %vm475, %v466, 0
      %v513 = vsel %vm475, %v468, 0
      %v516 = vsel %vm475, %v470, 0
      %v519 = vsel %vm475, %v472, 0
      %v522 = vsel %vm475, %v474, 0
      %524 = vmatpush.bf16.msra.mxu0 0
      %525 = vmatpush.bf16.msra.mxu0 0
      %526 = vmatpush.bf16.msra.mxu0 0
      %527 = vmatpush.bf16.msra.mxu0 0
      %528 = vmatpush.bf16.msra.mxu0 0
      %529 = vmatpush.bf16.msra.mxu0 0
      %530 = vmatpush.bf16.msra.mxu0 0
      %531 = vmatpush.bf16.msra.mxu0 %v445
      %532 = vmatmul.bf16.gmra.mxu0 %v477
      %v533 = vpop.f32.mrf.mxu0
      %v534 = vadd.f32 0.0, %v533
      %v535 = vpop.f32.mrf.mxu0
      %v536 = vadd.f32 0.0, %v535
      %537 = vmatmul.bf16.gmra.mxu0 %v480
      %v538 = vpop.f32.mrf.mxu0
      %v539 = vadd.f32 0.0, %v538
      %v540 = vpop.f32.mrf.mxu0
      %v541 = vadd.f32 0.0, %v540
      %542 = vmatmul.bf16.gmra.mxu0 %v483
      %v543 = vpop.f32.mrf.mxu0
      %v544 = vadd.f32 0.0, %v543
      %v545 = vpop.f32.mrf.mxu0
      %v546 = vadd.f32 0.0, %v545
      %547 = vmatmul.bf16.gmra.mxu0 %v486
      %v548 = vpop.f32.mrf.mxu0
      %v549 = vadd.f32 0.0, %v548
      %v550 = vpop.f32.mrf.mxu0
      %v551 = vadd.f32 0.0, %v550
      %552 = vmatmul.bf16.gmra.mxu0 %v489
      %v553 = vpop.f32.mrf.mxu0
      %v554 = vadd.f32 0.0, %v553
      %v555 = vpop.f32.mrf.mxu0
      %v556 = vadd.f32 0.0, %v555
      %557 = vmatmul.bf16.gmra.mxu0 %v492
      %v558 = vpop.f32.mrf.mxu0
      %v559 = vadd.f32 0.0, %v558
      %v560 = vpop.f32.mrf.mxu0
      %v561 = vadd.f32 0.0, %v560
      %562 = vmatmul.bf16.gmra.mxu0 %v495
      %v563 = vpop.f32.mrf.mxu0
      %v564 = vadd.f32 0.0, %v563
      %v565 = vpop.f32.mrf.mxu0
      %v566 = vadd.f32 0.0, %v565
      %567 = vmatmul.bf16.gmra.mxu0 %v498
      %v568 = vpop.f32.mrf.mxu0
      %v569 = vadd.f32 0.0, %v568
      %v570 = vpop.f32.mrf.mxu0
      %v571 = vadd.f32 0.0, %v570
      %572 = vmatmul.bf16.gmra.mxu0 %v501
      %v573 = vpop.f32.mrf.mxu0
      %v574 = vadd.f32 0.0, %v573
      %v575 = vpop.f32.mrf.mxu0
      %v576 = vadd.f32 0.0, %v575
      %577 = vmatmul.bf16.gmra.mxu0 %v504
      %v578 = vpop.f32.mrf.mxu0
      %v579 = vadd.f32 0.0, %v578
      %v580 = vpop.f32.mrf.mxu0
      %v581 = vadd.f32 0.0, %v580
      %582 = vmatmul.bf16.gmra.mxu0 %v507
      %v583 = vpop.f32.mrf.mxu0
      %v584 = vadd.f32 0.0, %v583
      %v585 = vpop.f32.mrf.mxu0
      %v586 = vadd.f32 0.0, %v585
      %587 = vmatmul.bf16.gmra.mxu0 %v510
      %v588 = vpop.f32.mrf.mxu0
      %v589 = vadd.f32 0.0, %v588
      %v590 = vpop.f32.mrf.mxu0
      %v591 = vadd.f32 0.0, %v590
      %592 = vmatmul.bf16.gmra.mxu0 %v513
      %v593 = vpop.f32.mrf.mxu0
      %v594 = vadd.f32 0.0, %v593
      %v595 = vpop.f32.mrf.mxu0
      %v596 = vadd.f32 0.0, %v595
      %597 = vmatmul.bf16.gmra.mxu0 %v516
      %v598 = vpop.f32.mrf.mxu0
      %v599 = vadd.f32 0.0, %v598
      %v600 = vpop.f32.mrf.mxu0
      %v601 = vadd.f32 0.0, %v600
      %602 = vmatmul.bf16.gmra.mxu0 %v519
      %v603 = vpop.f32.mrf.mxu0
      %v604 = vadd.f32 0.0, %v603
      %v605 = vpop.f32.mrf.mxu0
      %v606 = vadd.f32 0.0, %v605
      %607 = vmatmul.bf16.gmra.mxu0 %v522
      %v608 = vpop.f32.mrf.mxu0
      %v609 = vadd.f32 0.0, %v608
      %v610 = vpop.f32.mrf.mxu0
      %v611 = vadd.f32 0.0, %v610
      %612 = vdwg.mxu0
      %613 = vmatpush.bf16.msra.mxu0 0
      %614 = vmatpush.bf16.msra.mxu0 0
      %615 = vmatpush.bf16.msra.mxu0 0
      %616 = vmatpush.bf16.msra.mxu0 0
      %617 = vmatpush.bf16.msra.mxu0 0
      %618 = vmatpush.bf16.msra.mxu0 0
      %619 = vmatpush.bf16.msra.mxu0 0
      %620 = vmatpush.bf16.msra.mxu0 %v449
      %621 = vmatmul.bf16.gmra.mxu0 %v477
      %v622 = vpop.f32.mrf.mxu0
      %v623 = vadd.f32 0.0, %v622
      %v624 = vpop.f32.mrf.mxu0
      %v625 = vadd.f32 0.0, %v624
      %626 = vmatmul.bf16.gmra.mxu0 %v480
      %v627 = vpop.f32.mrf.mxu0
      %v628 = vadd.f32 0.0, %v627
      %v629 = vpop.f32.mrf.mxu0
      %v630 = vadd.f32 0.0, %v629
      %631 = vmatmul.bf16.gmra.mxu0 %v483
      %v632 = vpop.f32.mrf.mxu0
      %v633 = vadd.f32 0.0, %v632
      %v634 = vpop.f32.mrf.mxu0
      %v635 = vadd.f32 0.0, %v634
      %636 = vmatmul.bf16.gmra.mxu0 %v486
      %v637 = vpop.f32.mrf.mxu0
      %v638 = vadd.f32 0.0, %v637
      %v639 = vpop.f32.mrf.mxu0
      %v640 = vadd.f32 0.0, %v639
      %641 = vmatmul.bf16.gmra.mxu0 %v489
      %v642 = vpop.f32.mrf.mxu0
      %v643 = vadd.f32 0.0, %v642
      %v644 = vpop.f32.mrf.mxu0
      %v645 = vadd.f32 0.0, %v644
      %646 = vmatmul.bf16.gmra.mxu0 %v492
      %v647 = vpop.f32.mrf.mxu0
      %v648 = vadd.f32 0.0, %v647
      %v649 = vpop.f32.mrf.mxu0
      %v650 = vadd.f32 0.0, %v649
      %651 = vmatmul.bf16.gmra.mxu0 %v495
      %v652 = vpop.f32.mrf.mxu0
      %v653 = vadd.f32 0.0, %v652
      %v654 = vpop.f32.mrf.mxu0
      %v655 = vadd.f32 0.0, %v654
      %656 = vmatmul.bf16.gmra.mxu0 %v498
      %v657 = vpop.f32.mrf.mxu0
      %v658 = vadd.f32 0.0, %v657
      %v659 = vpop.f32.mrf.mxu0
      %v660 = vadd.f32 0.0, %v659
      %661 = vmatmul.bf16.gmra.mxu0 %v501
      %v662 = vpop.f32.mrf.mxu0
      %v663 = vadd.f32 0.0, %v662
      %v664 = vpop.f32.mrf.mxu0
      %v665 = vadd.f32 0.0, %v664
      %666 = vmatmul.bf16.gmra.mxu0 %v504
      %v667 = vpop.f32.mrf.mxu0
      %v668 = vadd.f32 0.0, %v667
      %v669 = vpop.f32.mrf.mxu0
      %v670 = vadd.f32 0.0, %v669
      %671 = vmatmul.bf16.gmra.mxu0 %v507
      %v672 = vpop.f32.mrf.mxu0
      %v673 = vadd.f32 0.0, %v672
      %v674 = vpop.f32.mrf.mxu0
      %v675 = vadd.f32 0.0, %v674
      %676 = vmatmul.bf16.gmra.mxu0 %v510
      %v677 = vpop.f32.mrf.mxu0
      %v678 = vadd.f32 0.0, %v677
      %v679 = vpop.f32.mrf.mxu0
      %v680 = vadd.f32 0.0, %v679
      %681 = vmatmul.bf16.gmra.mxu0 %v513
      %v682 = vpop.f32.mrf.mxu0
      %v683 = vadd.f32 0.0, %v682
      %v684 = vpop.f32.mrf.mxu0
      %v685 = vadd.f32 0.0, %v684
      %686 = vmatmul.bf16.gmra.mxu0 %v516
      %v687 = vpop.f32.mrf.mxu0
      %v688 = vadd.f32 0.0, %v687
      %v689 = vpop.f32.mrf.mxu0
      %v690 = vadd.f32 0.0, %v689
      %691 = vmatmul.bf16.gmra.mxu0 %v519
      %v692 = vpop.f32.mrf.mxu0
      %v693 = vadd.f32 0.0, %v692
      %v694 = vpop.f32.mrf.mxu0
      %v695 = vadd.f32 0.0, %v694
      %696 = vmatmul.bf16.gmra.mxu0 %v522
      %v697 = vpop.f32.mrf.mxu0
      %v698 = vadd.f32 0.0, %v697
      %v699 = vpop.f32.mrf.mxu0
      %v700 = vadd.f32 0.0, %v699
      %701 = vdwg.mxu0
      %v702 = vmax.f32 %v534, %v539
      %v703 = vmax.f32 %v536, %v541
      %v704 = vmax.f32 %v702, %v544
      %v705 = vmax.f32 %v703, %v546
      %v706 = vmax.f32 %v704, %v549
      %v707 = vmax.f32 %v705, %v551
      %v708 = vmax.f32 %v706, %v554
      %v709 = vmax.f32 %v707, %v556
      %v710 = vmax.f32 %v708, %v559
      %v711 = vmax.f32 %v709, %v561
      %v712 = vmax.f32 %v710, %v564
      %v713 = vmax.f32 %v711, %v566
      %v714 = vmax.f32 %v712, %v569
      %v715 = vmax.f32 %v713, %v571
      %v716 = vmax.f32 %v714, %v574
      %v717 = vmax.f32 %v715, %v576
      %v718 = vmax.f32 %v716, %v579
      %v719 = vmax.f32 %v717, %v581
      %v720 = vmax.f32 %v718, %v584
      %v721 = vmax.f32 %v719, %v586
      %v722 = vmax.f32 %v720, %v589
      %v723 = vmax.f32 %v721, %v591
      %v724 = vmax.f32 %v722, %v594
      %v725 = vmax.f32 %v723, %v596
      %v726 = vmax.f32 %v724, %v599
      %v727 = vmax.f32 %v725, %v601
      %v728 = vmax.f32 %v726, %v604
      %v729 = vmax.f32 %v727, %v606
      %v730 = vmax.f32 %v728, %v609
      %v731 = vmax.f32 %v729, %v611
      %v732 = vmax.f32 %v730, %v731
      %v733 = vrot.slane %v732, 4
      %v734 = vmax.f32 %v732, %v733
      %v735 = vrot.slane %v734, 2
      %v736 = vmax.f32 %v734, %v735
      %v737 = vrot.slane %v736, 1
      %v738 = vmax.f32 %v736, %v737
      %v739 = vmax.f32 %v623, %v628
      %v740 = vmax.f32 %v625, %v630
      %v741 = vmax.f32 %v739, %v633
      %v742 = vmax.f32 %v740, %v635
      %v743 = vmax.f32 %v741, %v638
      %v744 = vmax.f32 %v742, %v640
      %v745 = vmax.f32 %v743, %v643
      %v746 = vmax.f32 %v744, %v645
      %v747 = vmax.f32 %v745, %v648
      %v748 = vmax.f32 %v746, %v650
      %v749 = vmax.f32 %v747, %v653
      %v750 = vmax.f32 %v748, %v655
      %v751 = vmax.f32 %v749, %v658
      %v752 = vmax.f32 %v750, %v660
      %v753 = vmax.f32 %v751, %v663
      %v754 = vmax.f32 %v752, %v665
      %v755 = vmax.f32 %v753, %v668
      %v756 = vmax.f32 %v754, %v670
      %v757 = vmax.f32 %v755, %v673
      %v758 = vmax.f32 %v756, %v675
      %v759 = vmax.f32 %v757, %v678
      %v760 = vmax.f32 %v758, %v680
      %v761 = vmax.f32 %v759, %v683
      %v762 = vmax.f32 %v760, %v685
      %v763 = vmax.f32 %v761, %v688
      %v764 = vmax.f32 %v762, %v690
      %v765 = vmax.f32 %v763, %v693
      %v766 = vmax.f32 %v764, %v695
      %v767 = vmax.f32 %v765, %v698
      %v768 = vmax.f32 %v766, %v700
      %v769 = vmax.f32 %v767, %v768
      %v770 = vrot.slane %v769, 4
      %v771 = vmax.f32 %v769, %v770
      %v772 = vrot.slane %v771, 2
      %v773 = vmax.f32 %v771, %v772
      %v774 = vrot.slane %v773, 1
      %v775 = vmax.f32 %v773, %v774
      %v776 = vsub.f32 %v534, %v738
      %v777 = vsub.f32 %v623, %v775
      %v778 = vsub.f32 %v536, %v738
      %v779 = vsub.f32 %v625, %v775
      %v780 = vsub.f32 %v539, %v738
      %v781 = vsub.f32 %v628, %v775
      %v782 = vsub.f32 %v541, %v738
      %v783 = vsub.f32 %v630, %v775
      %v784 = vsub.f32 %v544, %v738
      %v785 = vsub.f32 %v633, %v775
      %v786 = vsub.f32 %v546, %v738
      %v787 = vsub.f32 %v635, %v775
      %v788 = vsub.f32 %v549, %v738
      %v789 = vsub.f32 %v638, %v775
      %v790 = vsub.f32 %v551, %v738
      %v791 = vsub.f32 %v640, %v775
      %v792 = vsub.f32 %v554, %v738
      %v793 = vsub.f32 %v643, %v775
      %v794 = vsub.f32 %v556, %v738
      %v795 = vsub.f32 %v645, %v775
      %v796 = vsub.f32 %v559, %v738
      %v797 = vsub.f32 %v648, %v775
      %v798 = vsub.f32 %v561, %v738
      %v799 = vsub.f32 %v650, %v775
      %v800 = vsub.f32 %v564, %v738
      %v801 = vsub.f32 %v653, %v775
      %v802 = vsub.f32 %v566, %v738
      %v803 = vsub.f32 %v655, %v775
      %v804 = vsub.f32 %v569, %v738
      %v805 = vsub.f32 %v658, %v775
      %v806 = vsub.f32 %v571, %v738
      %v807 = vsub.f32 %v660, %v775
      %v808 = vsub.f32 %v574, %v738
      %v809 = vsub.f32 %v663, %v775
      %v810 = vsub.f32 %v576, %v738
      %v811 = vsub.f32 %v665, %v775
      %v812 = vsub.f32 %v579, %v738
      %v813 = vsub.f32 %v668, %v775
      %v814 = vsub.f32 %v581, %v738
      %v815 = vsub.f32 %v670, %v775
      %v816 = vsub.f32 %v584, %v738
      %v817 = vsub.f32 %v673, %v775
      %v818 = vsub.f32 %v586, %v738
      %v819 = vsub.f32 %v675, %v775
      %v820 = vsub.f32 %v589, %v738
      %v821 = vsub.f32 %v678, %v775
      %v822 = vsub.f32 %v591, %v738
      %v823 = vsub.f32 %v680, %v775
      %v824 = vsub.f32 %v594, %v738
      %v825 = vsub.f32 %v683, %v775
      %v826 = vsub.f32 %v596, %v738
      %v827 = vsub.f32 %v685, %v775
      %v828 = vsub.f32 %v599, %v738
      %v829 = vsub.f32 %v688, %v775
      %v830 = vsub.f32 %v601, %v738
      %v831 = vsub.f32 %v690, %v775
      %v832 = vsub.f32 %v604, %v738
      %v833 = vsub.f32 %v693, %v775
      %v834 = vsub.f32 %v606, %v738
      %v835 = vsub.f32 %v695, %v775
      %v836 = vsub.f32 %v609, %v738
      %v837 = vsub.f32 %v698, %v775
      %v838 = vsub.f32 %v611, %v738
      %v839 = vsub.f32 %v700, %v775
      %v840 = vpack.c.bf16 %v778, %v776
      %v841 = vpack.c.bf16 %v779, %v777
      %v842 = vpack.c.bf16 %v782, %v780
      %v843 = vpack.c.bf16 %v783, %v781
      %v844 = vpack.c.bf16 %v786, %v784
      %v845 = vpack.c.bf16 %v787, %v785
      %v846 = vpack.c.bf16 %v790, %v788
      %v847 = vpack.c.bf16 %v791, %v789
      %v848 = vpack.c.bf16 %v794, %v792
      %v849 = vpack.c.bf16 %v795, %v793
      %v850 = vpack.c.bf16 %v798, %v796
      %v851 = vpack.c.bf16 %v799, %v797
      %v852 = vpack.c.bf16 %v802, %v800
      %v853 = vpack.c.bf16 %v803, %v801
      %v854 = vpack.c.bf16 %v806, %v804
      %v855 = vpack.c.bf16 %v807, %v805
      %v856 = vpack.c.bf16 %v810, %v808
      %v857 = vpack.c.bf16 %v811, %v809
      %v858 = vpack.c.bf16 %v814, %v812
      %v859 = vpack.c.bf16 %v815, %v813
      %v860 = vpack.c.bf16 %v818, %v816
      %v861 = vpack.c.bf16 %v819, %v817
      %v862 = vpack.c.bf16 %v822, %v820
      %v863 = vpack.c.bf16 %v823, %v821
      %v864 = vpack.c.bf16 %v826, %v824
      %v865 = vpack.c.bf16 %v827, %v825
      %v866 = vpack.c.bf16 %v830, %v828
      %v867 = vpack.c.bf16 %v831, %v829
      %v868 = vpack.c.bf16 %v834, %v832
      %v869 = vpack.c.bf16 %v835, %v833
      %v870 = vpack.c.bf16 %v838, %v836
      %v871 = vpack.c.bf16 %v839, %v837
      %v872 = vunpack.c.l.bf16 %v840
      %v873 = vunpack.c.l.bf16 %v841
      %v874 = vunpack.c.h.bf16 %v840
      %v875 = vunpack.c.h.bf16 %v841
      %v876 = vunpack.c.l.bf16 %v842
      %v877 = vunpack.c.l.bf16 %v843
      %v878 = vunpack.c.h.bf16 %v842
      %v879 = vunpack.c.h.bf16 %v843
      %v880 = vunpack.c.l.bf16 %v844
      %v881 = vunpack.c.l.bf16 %v845
      %v882 = vunpack.c.h.bf16 %v844
      %v883 = vunpack.c.h.bf16 %v845
      %v884 = vunpack.c.l.bf16 %v846
      %v885 = vunpack.c.l.bf16 %v847
      %v886 = vunpack.c.h.bf16 %v846
      %v887 = vunpack.c.h.bf16 %v847
      %v888 = vunpack.c.l.bf16 %v848
      %v889 = vunpack.c.l.bf16 %v849
      %v890 = vunpack.c.h.bf16 %v848
      %v891 = vunpack.c.h.bf16 %v849
      %v892 = vunpack.c.l.bf16 %v850
      %v893 = vunpack.c.l.bf16 %v851
      %v894 = vunpack.c.h.bf16 %v850
      %v895 = vunpack.c.h.bf16 %v851
      %v896 = vunpack.c.l.bf16 %v852
      %v897 = vunpack.c.l.bf16 %v853
      %v898 = vunpack.c.h.bf16 %v852
      %v899 = vunpack.c.h.bf16 %v853
      %v900 = vunpack.c.l.bf16 %v854
      %v901 = vunpack.c.l.bf16 %v855
      %v902 = vunpack.c.h.bf16 %v854
      %v903 = vunpack.c.h.bf16 %v855
      %v904 = vunpack.c.l.bf16 %v856
      %v905 = vunpack.c.l.bf16 %v857
      %v906 = vunpack.c.h.bf16 %v856
      %v907 = vunpack.c.h.bf16 %v857
      %v908 = vunpack.c.l.bf16 %v858
      %v909 = vunpack.c.l.bf16 %v859
      %v910 = vunpack.c.h.bf16 %v858
      %v911 = vunpack.c.h.bf16 %v859
      %v912 = vunpack.c.l.bf16 %v860
      %v913 = vunpack.c.l.bf16 %v861
      %v914 = vunpack.c.h.bf16 %v860
      %v915 = vunpack.c.h.bf16 %v861
      %v916 = vunpack.c.l.bf16 %v862
      %v917 = vunpack.c.l.bf16 %v863
      %v918 = vunpack.c.h.bf16 %v862
      %v919 = vunpack.c.h.bf16 %v863
      %v920 = vunpack.c.l.bf16 %v864
      %v921 = vunpack.c.l.bf16 %v865
      %v922 = vunpack.c.h.bf16 %v864
      %v923 = vunpack.c.h.bf16 %v865
      %v924 = vunpack.c.l.bf16 %v866
      %v925 = vunpack.c.l.bf16 %v867
      %v926 = vunpack.c.h.bf16 %v866
      %v927 = vunpack.c.h.bf16 %v867
      %v928 = vunpack.c.l.bf16 %v868
      %v929 = vunpack.c.l.bf16 %v869
      %v930 = vunpack.c.h.bf16 %v868
      %v931 = vunpack.c.h.bf16 %v869
      %v932 = vunpack.c.l.bf16 %v870
      %v933 = vunpack.c.l.bf16 %v871
      %v934 = vunpack.c.h.bf16 %v870
      %v935 = vunpack.c.h.bf16 %v871
      %v936 = vmul.f32 %v872, 1.442695
      %v937 = vpow.pop %v936
      %v938 = vmul.f32 %v873, 1.442695
      %v939 = vpow.pop %v938
      %v940 = vmul.f32 %v874, 1.442695
      %v941 = vpow.pop %v940
      %v942 = vmul.f32 %v875, 1.442695
      %v943 = vpow.pop %v942
      %v944 = vmul.f32 %v876, 1.442695
      %v945 = vpow.pop %v944
      %v946 = vmul.f32 %v877, 1.442695
      %v947 = vpow.pop %v946
      %v948 = vmul.f32 %v878, 1.442695
      %v949 = vpow.pop %v948
      %v950 = vmul.f32 %v879, 1.442695
      %v951 = vpow.pop %v950
      %v952 = vmul.f32 %v880, 1.442695
      %v953 = vpow.pop %v952
      %v954 = vmul.f32 %v881, 1.442695
      %v955 = vpow.pop %v954
      %v956 = vmul.f32 %v882, 1.442695
      %v957 = vpow.pop %v956
      %v958 = vmul.f32 %v883, 1.442695
      %v959 = vpow.pop %v958
      %v960 = vmul.f32 %v884, 1.442695
      %v961 = vpow.pop %v960
      %v962 = vmul.f32 %v885, 1.442695
      %v963 = vpow.pop %v962
      %v964 = vmul.f32 %v886, 1.442695
      %v965 = vpow.pop %v964
      %v966 = vmul.f32 %v887, 1.442695
      %v967 = vpow.pop %v966
      %v968 = vmul.f32 %v888, 1.442695
      %v969 = vpow.pop %v968
      %v970 = vmul.f32 %v889, 1.442695
      %v971 = vpow.pop %v970
      %v972 = vmul.f32 %v890, 1.442695
      %v973 = vpow.pop %v972
      %v974 = vmul.f32 %v891, 1.442695
      %v975 = vpow.pop %v974
      %v976 = vmul.f32 %v892, 1.442695
      %v977 = vpow.pop %v976
      %v978 = vmul.f32 %v893, 1.442695
      %v979 = vpow.pop %v978
      %v980 = vmul.f32 %v894, 1.442695
      %v981 = vpow.pop %v980
      %v982 = vmul.f32 %v895, 1.442695
      %v983 = vpow.pop %v982
      %v984 = vmul.f32 %v896, 1.442695
      %v985 = vpow.pop %v984
      %v986 = vmul.f32 %v897, 1.442695
      %v987 = vpow.pop %v986
      %v988 = vmul.f32 %v898, 1.442695
      %v989 = vpow.pop %v988
      %v990 = vmul.f32 %v899, 1.442695
      %v991 = vpow.pop %v990
      %v992 = vmul.f32 %v900, 1.442695
      %v993 = vpow.pop %v992
      %v994 = vmul.f32 %v901, 1.442695
      %v995 = vpow.pop %v994
      %v996 = vmul.f32 %v902, 1.442695
      %v997 = vpow.pop %v996
      %v998 = vmul.f32 %v903, 1.442695
      %v999 = vpow.pop %v998
      %v1000 = vmul.f32 %v904, 1.442695
      %v1001 = vpow.pop %v1000
      %v1002 = vmul.f32 %v905, 1.442695
      %v1003 = vpow.pop %v1002
      %v1004 = vmul.f32 %v906, 1.442695
      %v1005 = vpow.pop %v1004
      %v1006 = vmul.f32 %v907, 1.442695
      %v1007 = vpow.pop %v1006
      %v1008 = vmul.f32 %v908, 1.442695
      %v1009 = vpow.pop %v1008
      %v1010 = vmul.f32 %v909, 1.442695
      %v1011 = vpow.pop %v1010
      %v1012 = vmul.f32 %v910, 1.442695
      %v1013 = vpow.pop %v1012
      %v1014 = vmul.f32 %v911, 1.442695
      %v1015 = vpow.pop %v1014
      %v1016 = vmul.f32 %v912, 1.442695
      %v1017 = vpow.pop %v1016
      %v1018 = vmul.f32 %v913, 1.442695
      %v1019 = vpow.pop %v1018
      %v1020 = vmul.f32 %v914, 1.442695
      %v1021 = vpow.pop %v1020
      %v1022 = vmul.f32 %v915, 1.442695
      %v1023 = vpow.pop %v1022
      %v1024 = vmul.f32 %v916, 1.442695
      %v1025 = vpow.pop %v1024
      %v1026 = vmul.f32 %v917, 1.442695
      %v1027 = vpow.pop %v1026
      %v1028 = vmul.f32 %v918, 1.442695
      %v1029 = vpow.pop %v1028
      %v1030 = vmul.f32 %v919, 1.442695
      %v1031 = vpow.pop %v1030
      %v1032 = vmul.f32 %v920, 1.442695
      %v1033 = vpow.pop %v1032
      %v1034 = vmul.f32 %v921, 1.442695
      %v1035 = vpow.pop %v1034
      %v1036 = vmul.f32 %v922, 1.442695
      %v1037 = vpow.pop %v1036
      %v1038 = vmul.f32 %v923, 1.442695
      %v1039 = vpow.pop %v1038
      %v1040 = vmul.f32 %v924, 1.442695
      %v1041 = vpow.pop %v1040
      %v1042 = vmul.f32 %v925, 1.442695
      %v1043 = vpow.pop %v1042
      %v1044 = vmul.f32 %v926, 1.442695
      %v1045 = vpow.pop %v1044
      %v1046 = vmul.f32 %v927, 1.442695
      %v1047 = vpow.pop %v1046
      %v1048 = vmul.f32 %v928, 1.442695
      %v1049 = vpow.pop %v1048
      %v1050 = vmul.f32 %v929, 1.442695
      %v1051 = vpow.pop %v1050
      %v1052 = vmul.f32 %v930, 1.442695
      %v1053 = vpow.pop %v1052
      %v1054 = vmul.f32 %v931, 1.442695
      %v1055 = vpow.pop %v1054
      %v1056 = vmul.f32 %v932, 1.442695
      %v1057 = vpow.pop %v1056
      %v1058 = vmul.f32 %v933, 1.442695
      %v1059 = vpow.pop %v1058
      %v1060 = vmul.f32 %v934, 1.442695
      %v1061 = vpow.pop %v1060
      %v1062 = vmul.f32 %v935, 1.442695
      %v1063 = vpow.pop %v1062
      %v1064 = vpack.c.bf16 %v941, %v937
      %v1065 = vpack.c.bf16 %v943, %v939
      %v1066 = vpack.c.bf16 %v949, %v945
      %v1067 = vpack.c.bf16 %v951, %v947
      %v1068 = vpack.c.bf16 %v957, %v953
      %v1069 = vpack.c.bf16 %v959, %v955
      %v1070 = vpack.c.bf16 %v965, %v961
      %v1071 = vpack.c.bf16 %v967, %v963
      %v1072 = vpack.c.bf16 %v973, %v969
      %v1073 = vpack.c.bf16 %v975, %v971
      %v1074 = vpack.c.bf16 %v981, %v977
      %v1075 = vpack.c.bf16 %v983, %v979
      %v1076 = vpack.c.bf16 %v989, %v985
      %v1077 = vpack.c.bf16 %v991, %v987
      %v1078 = vpack.c.bf16 %v997, %v993
      %v1079 = vpack.c.bf16 %v999, %v995
      %v1080 = vpack.c.bf16 %v1005, %v1001
      %v1081 = vpack.c.bf16 %v1007, %v1003
      %v1082 = vpack.c.bf16 %v1013, %v1009
      %v1083 = vpack.c.bf16 %v1015, %v1011
      %v1084 = vpack.c.bf16 %v1021, %v1017
      %v1085 = vpack.c.bf16 %v1023, %v1019
      %v1086 = vpack.c.bf16 %v1029, %v1025
      %v1087 = vpack.c.bf16 %v1031, %v1027
      %v1088 = vpack.c.bf16 %v1037, %v1033
      %v1089 = vpack.c.bf16 %v1039, %v1035
      %v1090 = vpack.c.bf16 %v1045, %v1041
      %v1091 = vpack.c.bf16 %v1047, %v1043
      %v1092 = vpack.c.bf16 %v1053, %v1049
      %v1093 = vpack.c.bf16 %v1055, %v1051
      %v1094 = vpack.c.bf16 %v1061, %v1057
      %v1095 = vpack.c.bf16 %v1063, %v1059
      %v1096 = vpack.c.bf16 %v409, %v409
      %v1097 = vpack.c.bf16 %v427, %v427
      %1098 = vmatpush.bf16.msra.mxu0 %v1078
      %1099 = vmatpush.bf16.msra.mxu0 %v1076
      %1100 = vmatpush.bf16.msra.mxu0 %v1074
      %1101 = vmatpush.bf16.msra.mxu0 %v1072
      %1102 = vmatpush.bf16.msra.mxu0 %v1070
      %1103 = vmatpush.bf16.msra.mxu0 %v1068
      %1104 = vmatpush.bf16.msra.mxu0 %v1066
      %1105 = vmatpush.bf16.msra.mxu0 %v1064
      %1106 = vmatmul.bf16.gmra.mxu0 %v1096
      %v1107 = vpop.f32.mrf.mxu0
      %v1108 = vadd.f32 0.0, %v1107
      %v1109 = vpop.f32.mrf.mxu0
      %1110 = vdwg.mxu0
      %1111 = vmatpush.bf16.msra.mxu0 %v1094
      %1112 = vmatpush.bf16.msra.mxu0 %v1092
      %1113 = vmatpush.bf16.msra.mxu0 %v1090
      %1114 = vmatpush.bf16.msra.mxu0 %v1088
      %1115 = vmatpush.bf16.msra.mxu0 %v1086
      %1116 = vmatpush.bf16.msra.mxu0 %v1084
      %1117 = vmatpush.bf16.msra.mxu0 %v1082
      %1118 = vmatpush.bf16.msra.mxu0 %v1080
      %1119 = vmatmul.bf16.gmra.mxu0 %v1097
      %v1120 = vpop.f32.mrf.mxu0
      %v1121 = vadd.f32 %v1108, %v1120
      %v1122 = vpop.f32.mrf.mxu0
      %1123 = vdwg.mxu0
      %1124 = vmatpush.bf16.msra.mxu0 %v1079
      %1125 = vmatpush.bf16.msra.mxu0 %v1077
      %1126 = vmatpush.bf16.msra.mxu0 %v1075
      %1127 = vmatpush.bf16.msra.mxu0 %v1073
      %1128 = vmatpush.bf16.msra.mxu0 %v1071
      %1129 = vmatpush.bf16.msra.mxu0 %v1069
      %1130 = vmatpush.bf16.msra.mxu0 %v1067
      %1131 = vmatpush.bf16.msra.mxu0 %v1065
      %1132 = vmatmul.bf16.gmra.mxu0 %v1096
      %v1133 = vpop.f32.mrf.mxu0
      %v1134 = vadd.f32 0.0, %v1133
      %v1135 = vpop.f32.mrf.mxu0
      %1136 = vdwg.mxu0
      %1137 = vmatpush.bf16.msra.mxu0 %v1095
      %1138 = vmatpush.bf16.msra.mxu0 %v1093
      %1139 = vmatpush.bf16.msra.mxu0 %v1091
      %1140 = vmatpush.bf16.msra.mxu0 %v1089
      %1141 = vmatpush.bf16.msra.mxu0 %v1087
      %1142 = vmatpush.bf16.msra.mxu0 %v1085
      %1143 = vmatpush.bf16.msra.mxu0 %v1083
      %1144 = vmatpush.bf16.msra.mxu0 %v1081
      %1145 = vmatmul.bf16.gmra.mxu0 %v1097
      %v1146 = vpop.f32.mrf.mxu0
      %v1147 = vadd.f32 %v1134, %v1146
      %v1148 = vpop.f32.mrf.mxu0
      %1149 = vdwg.mxu0
      %v1150 = vrcp.pop %v1121
      %v1151 = vrcp.pop %v1147
      %v1152 = vperm.slane %v1150, 0
      %v1153 = vperm.slane %v1151, 0
      %v1154 = vmul.f32 %v1121, %v1152
      %v1155 = vmul.f32 %v1147, %v1153
      %v1156 = vpack.c.bf16 %v1154, %v1154
      %v1157 = vpack.c.bf16 %v1155, %v1155
      %1159 = vset.pattern.permute.xlu0 0
      %1160 = vperm.xlu0 %1159, %v264
      %v1161 = vpop.permute.xlu0 %1160
      %v1164 = vsel %vm380, %v258, 0
      %v1167 = vsel %vm387, %v1156, 0
      %v1170 = vsel %vm387, %v1157, 0
      %1172 = vmatpush.bf16.msra.mxu0 0
      %1173 = vmatpush.bf16.msra.mxu0 0
      %1174 = vmatpush.bf16.msra.mxu0 0
      %1175 = vmatpush.bf16.msra.mxu0 0
      %1176 = vmatpush.bf16.msra.mxu0 0
      %1177 = vmatpush.bf16.msra.mxu0 0
      %1178 = vmatpush.bf16.msra.mxu0 0
      %1179 = vmatpush.bf16.msra.mxu0 %v1167
      %1180 = vmatmul.bf16.gmra.mxu0 %v1164
      %v1181 = vpop.f32.mrf.mxu0
      %v1182 = vadd.f32 %v1161, %v1181
      %v1183 = vpop.f32.mrf.mxu0
      %1184 = vdwg.mxu0
      %1185 = vmatpush.bf16.msra.mxu0 0
      %1186 = vmatpush.bf16.msra.mxu0 0
      %1187 = vmatpush.bf16.msra.mxu0 0
      %1188 = vmatpush.bf16.msra.mxu0 0
      %1189 = vmatpush.bf16.msra.mxu0 0
      %1190 = vmatpush.bf16.msra.mxu0 0
      %1191 = vmatpush.bf16.msra.mxu0 0
      %1192 = vmatpush.bf16.msra.mxu0 %v1170
      %1193 = vmatmul.bf16.gmra.mxu0 %v1164
      %v1194 = vpop.f32.mrf.mxu0
      %v1195 = vadd.f32 %v1161, %v1194
      %v1196 = vpop.f32.mrf.mxu0
      %1197 = vdwg.mxu0
      %v1198 = vxor.u32 %v1182, 2147483648
      %v1199 = vxor.u32 %v1195, 2147483648
      %v1200 = vmul.f32 %v1198, 1.442695
      %v1201 = vpow.pop %v1200
      %v1202 = vmul.f32 %v1199, 1.442695
      %v1203 = vpow.pop %v1202
      %v1204 = vadd.f32 %v1201, 1.0
      %v1205 = vadd.f32 %v1203, 1.0
      %v1206 = vrcp.pop %v1204
      %v1207 = vmul.f32 %v1204, %v1206
      %v1208 = vsub.f32 1.0, %v1207
      %v1209 = vmul.f32 %v1206, %v1208
      %v1210 = vadd.f32 %v1206, %v1209
      %vm1211 = vweird.f32 %v1204
      %vm1212 = vweird.f32 %v1206
      %vm1213 = vmor %vm1211, %vm1212
      %v1214 = vsel %vm1213, %v1206, %v1210
      %v1215 = vand.u32 2147483647, %v1204
      %vm1216 = vcmp.eq.f32.partialorder %v1215, 8.507059e+37
      %v1217 = vand.u32 %v1204, 2147483648
      %v1218 = vor.u32 1.1754944e-38, %v1217
      %v1219 = vsel %vm1216, %v1218, %v1214
      %v1220 = vmul.f32 1.0, %v1219
      %v1221 = vrcp.pop %v1205
      %v1222 = vmul.f32 %v1205, %v1221
      %v1223 = vsub.f32 1.0, %v1222
      %v1224 = vmul.f32 %v1221, %v1223
      %v1225 = vadd.f32 %v1221, %v1224
      %vm1226 = vweird.f32 %v1205
      %vm1227 = vweird.f32 %v1221
      %vm1228 = vmor %vm1226, %vm1227
      %v1229 = vsel %vm1228, %v1221, %v1225
      %v1230 = vand.u32 2147483647, %v1205
      %vm1231 = vcmp.eq.f32.partialorder %v1230, 8.507059e+37
      %v1232 = vand.u32 %v1205, 2147483648
      %v1233 = vor.u32 1.1754944e-38, %v1232
      %v1234 = vsel %vm1231, %v1233, %v1229
      %v1235 = vmul.f32 1.0, %v1234
      %v1236 = vmul.f32 %v1182, %v1220
      %v1237 = vmul.f32 %v1195, %v1235
      %1238 = vst [vmem:[#allocation1] ss:$2 sm:$0xff] %v253
      %v1239 = vld.sshfl [vmem:[#allocation1] sm:$0xff pattern:$0x75316420]
      %v1240 = vld.sshfl [vmem:[#allocation1 + $0x8] sm:$0xff pattern:$0x75316420]
      %v1243 = vadd.f32 %v1236, %v1239
      %v1244 = vadd.f32 %v1237, %v1240
      %v1247 = vrot.slane %v1244, 4
      %v1248 = vsel %vm387, %v1243, %v1247
      %1250 = vst [vmem:[%s251] sm:$0xff] %v1248
      %p1251 = scmp.lt.s32.totalorder %s17, 1
      %s1252 = scalar_select %p1251, %s17, 1
      %s1253 = smul.addr %s1252, 2
      %s1254 = smul.addr %s1253, 4
      %s1255 = scalar_lea.vmem %s6, %s1254
      // Predicated region
      $region45: #{bottleneck_res_atn_mhsa.1} parent=43 // pred_check
        %p1256 = pneg %p166
      $region46: #{bottleneck_res_atn_mhsa.1} parent=43 // pred_check_branch
        %1258 = sbr.rel (%p1256) target = $region48
      $region47: #{bottleneck_res_atn_mhsa.1} parent=43 // pred_region
        _
      $region48: #{bottleneck_res_atn_mhsa.1} parent=43 // pred_fallthru
        _
    $region44: #{bottleneck_res_atn_mhsa.1} parent=5 // pred_fallthru
      _
    %p1259 = scmp.le.s32.totalorder 2, %s12
    // Predicated region
    $region49: #{bottleneck_res_atn_mhsa.1} parent=5 // pred_check
      %p1260 = pneg %p1259
    $region50: #{bottleneck_res_atn_mhsa.1} parent=5 // pred_check_branch
      %1262 = sbr.rel (%p1260) target = $region52
    $region51: #{bottleneck_res_atn_mhsa.1} parent=5 // pred_region
      %s1263 = ssub.s32 %s12, 2
      // Predicated region
      $region53: #{bottleneck_res_atn_mhsa.1} parent=51 // pred_check
        %p1264 = pneg %p172
      $region54: #{bottleneck_res_atn_mhsa.1} parent=51 // pred_check_branch
        %1266 = sbr.rel (%p1264) target = $region56
      $region55: #{bottleneck_res_atn_mhsa.1} parent=51 // pred_region
        %p1267 = scmp.lt.s32.totalorder %s18, 1
        %s1268 = scalar_select %p1267, %s18, 1
        %s1269 = smul.addr %s1268, 2
        %s1270 = smul.addr %s1269, 4
        %s1271 = scalar_lea.vmem %s6, %s1270
      $region56: #{bottleneck_res_atn_mhsa.1} parent=51 // pred_fallthru
        _
    $region52: #{bottleneck_res_atn_mhsa.1} parent=5 // pred_fallthru
      _
  $region6: #{bottleneck_res_atn_mhsa.1} parent=0 // loop_footer
    %s16 = sadd.s32 1, %s12
  $region7: #{bottleneck_res_atn_mhsa.1} parent=0 // loop_footer_branch
    %11 = sbr.rel target = $region3
  $region8: #{bottleneck_res_atn_mhsa.1} parent=0 // loop_exit
    _

</llo_original>
